<compile_context>
chip_gen: v7x
topology: tpu7x:2x2x1
jax: 0.10.0
libtpu: 0.0.40
codegen_flags: <defaults>
</compile_context>

<pallas_src>
import jax
import jax.numpy as jnp
from jax.experimental import pallas as pl
from jax.experimental.pallas import tpu as pltpu


# Packed parameter layout: 25 f32 scalars (scalar-prefetched into SMEM).
#   [0:2]   cxy_i  = ws_i * wp / HW
#   [2:4]   cx_i   = ws_i * bp / HW
#   [4:6]   cy_i   = bs_i * wp / HW
#   [6:8]   cc_i   = bs_i * bp          (constant term; HW/HW cancels)
#   [8:10]  w2_i   conv_state2 folded weight
#   [10:12] b2_i   conv_state2 folded bias
#   [12]    g1a1   gcn1.conv1 weight     [13]  g1b1  gcn1.conv1 bias
#   [14:18] g1a2   gcn1.conv2 weight (2x2, row-major)
#   [18]    g2a1   gcn2.conv1 weight     [19]  g2b1  gcn2.conv1 bias
#   [20:24] g2a2'  wf * gcn2.conv2 weight (fc_2 weight folded in)
#   [24]    bf     blocker BN folded bias


def _fi_kernel(p_ref, x_ref, y_ref, out_ref):
    xf = x_ref[...].astype(jnp.float32)          # (TB, HW) lane-dense
    yf = y_ref[...].astype(jnp.float32)          # (TB, HW)

    # Scalar parameter reads from SMEM (no vector loads for tiny params).
    cxy0, cxy1 = p_ref[0], p_ref[1]
    cx0, cx1 = p_ref[2], p_ref[3]
    cy0, cy1 = p_ref[4], p_ref[5]
    cc0, cc1 = p_ref[6], p_ref[7]
    w20, w21 = p_ref[8], p_ref[9]
    b20, b21 = p_ref[10], p_ref[11]
    g1a1, g1b1 = p_ref[12], p_ref[13]
    g1a2 = (p_ref[14], p_ref[15], p_ref[16], p_ref[17])
    g2a1, g2b1 = p_ref[18], p_ref[19]
    g2a2 = (p_ref[20], p_ref[21], p_ref[22], p_ref[23])
    bf = p_ref[24]

    # One full-width multiply + three lane reductions (XLU has slack).
    s_xy = jnp.sum(xf * yf, axis=-1, keepdims=True)   # (TB, 1)
    s_x = jnp.sum(xf, axis=-1, keepdims=True)
    s_y = jnp.sum(yf, axis=-1, keepdims=True)

    # z_i = sum((ws_i*x + bs_i)*(wp*y + bp)) / HW, expanded with pack-time
    # coefficients -> pure per-row scalar FMAs.
    z0 = cxy0 * s_xy + cx0 * s_x + cy0 * s_y + cc0
    z1 = cxy1 * s_xy + cx1 * s_x + cy1 * s_y + cc1

    def gcn(u0, u1, a1, b1, a2):
        a00, a01, a10, a11 = a2
        # conv1 over the node axis (num_node == 1 -> scalar FMA) + residual
        h0 = a1 * u0 + b1 + u0
        h1 = a1 * u1 + b1 + u1
        # LeakyReLU(0.2)
        h0 = jnp.where(h0 >= 0.0, h0, 0.2 * h0)
        h1 = jnp.where(h1 >= 0.0, h1, 0.2 * h1)
        # conv2 over the state axis (2x2, bias=False) -> 4 scalar FMAs
        return a00 * h0 + a01 * h1, a10 * h0 + a11 * h1

    z0, z1 = gcn(z0, z1, g1a1, g1b1, g1a2)
    z0, z1 = gcn(z0, z1, g2a1, g2b1, g2a2)   # fc_2 weight already folded in

    # out = x + z0*(w20*x + b20) + z1*(w21*x + b21) + bf  ==  c_mul*x + c_add
    c_mul = 1.0 + z0 * w20 + z1 * w21        # (TB, 1)
    c_add = z0 * b20 + z1 * b21 + bf         # (TB, 1)

    out_ref[...] = (c_mul * xf + c_add).astype(out_ref.dtype)


def pack_params(params, hw):
    """Fold 1/HW and fc_2 into the tiny params and flatten to one f32 vector."""
    (ws, bs, wp, bp, ws2, bs2,
     g1a1, g1b1, g1a2, g2a1, g2b1, g2a2, wf, bf) = params
    ws = ws.reshape(-1)            # (2,)
    bs = bs.reshape(-1)            # (2,)
    wp_s = wp.reshape(())          # scalar
    bp_s = bp.reshape(())          # scalar
    inv_hw = jnp.float32(1.0 / hw)

    cxy = ws * wp_s * inv_hw
    cx = ws * bp_s * inv_hw
    cy = bs * wp_s * inv_hw
    cc = bs * bp_s                 # (bs*bp*HW)/HW

    g2a2_f = (wf.reshape(()) * g2a2).reshape(-1)   # fold fc_2 weight

    flat = jnp.concatenate([
        cxy, cx, cy, cc,
        ws2.reshape(-1), bs2.reshape(-1),
        g1a1.reshape(-1), g1b1.reshape(-1), g1a2.reshape(-1),
        g2a1.reshape(-1), g2b1.reshape(-1), g2a2_f,
        bf.reshape(-1),
    ]).astype(jnp.float32)
    return flat                    # (25,)


def _round_up(n, m):
    return ((n + m - 1) // m) * m


def fi_forward(x, y, params, *, tb_max=1024):
    B, C, H, W = x.shape
    HW = H * W
    # The PyTorch module only type-checks for num_in == num_mid == 1.
    assert C == 1, "FI kernel hard-codes num_in == 1"
    assert params[0].shape == (2, 1), "FI kernel hard-codes num_mid == 1 (num_s == 2)"

    xf = x.reshape(B, HW)
    yf = y.reshape(B, HW)
    # If the surrounding model runs in bf16, pass bf16 here; the kernel
    # upcasts internally (halves HBM read traffic for this mem-bound kernel).
    packed = pack_params(params, HW)                 # (25,) f32, SMEM

    # Batch tile: multiple of 8 sublanes, capped at tb_max rows (~1 MiB/block
    # at HW=256 f32) so 3 streamed arrays x 2 pipeline buffers stay well
    # inside every generation's scoped-VMEM default (v5e 16 MiB, v7x 32 MiB).
    TB = min(tb_max, _round_up(B, 8))
    B_pad = _round_up(B, TB)                          # full tiles, full sublanes
    if B_pad != B:
        pad = ((0, B_pad - B), (0, 0))
        xf = jnp.pad(xf, pad)
        yf = jnp.pad(yf, pad)

    out = pl.pallas_call(
        _fi_kernel,
        out_shape=jax.ShapeDtypeStruct((B_pad, HW), xf.dtype),
        grid_spec=pltpu.PrefetchScalarGridSpec(
            num_scalar_prefetch=1,                    # packed params -> SMEM
            grid=(B_pad // TB,),
            in_specs=[
                pl.BlockSpec((TB, HW), lambda i, p: (i, 0)),   # x slab tile
                pl.BlockSpec((TB, HW), lambda i, p: (i, 0)),   # y slab tile
            ],
            out_specs=pl.BlockSpec((TB, HW), lambda i, p: (i, 0)),
        ),
        compiler_params=pltpu.CompilerParams(
            dimension_semantics=("parallel",)),       # v7x: 2 TCs split batch
    )(packed, xf, yf)

    return out[:B].reshape(B, C, H, W)


def make_params(key, num_in, num_mid):
    num_s = 2 * num_mid
    num_n = 1 * num_mid
    eps = 1e-5
    ks = jax.random.split(key, 16)

    def u(k, shape, scale=0.5):
        return jax.random.uniform(k, shape, jnp.float32, -scale, scale)

    def fold_conv_bn(kw, kb, kg, kbe, out_c, in_c):
        w = u(kw, (out_c, in_c))            # 1x1 conv weight
        b = u(kb, (out_c,))                 # conv bias
        gamma = 1.0 + u(kg, (out_c,), 0.1)  # BN weight
        beta = u(kbe, (out_c,), 0.1)        # BN bias
        rm = jnp.zeros((out_c,), jnp.float32)
        rv = jnp.ones((out_c,), jnp.float32)
        s = gamma / jnp.sqrt(rv + eps)
        return w * s[:, None], (s * (b - rm) + beta).reshape(out_c, 1)

    ws, bs = fold_conv_bn(ks[0], ks[1], ks[2], ks[3], num_s, num_in)      # conv_state
    wp, bp = fold_conv_bn(ks[4], ks[5], ks[6], ks[7], num_n, num_in)      # conv_proj
    ws2, bs2 = fold_conv_bn(ks[8], ks[9], ks[10], ks[11], num_s, num_in)  # conv_state2

    kg = jax.random.split(ks[12], 6)
    g1a1 = u(kg[0], (num_n, num_n))
    g1b1 = u(kg[1], (1, num_n))
    g1a2 = u(kg[2], (num_s, num_s))
    g2a1 = u(kg[3], (num_n, num_n))
    g2b1 = u(kg[4], (1, num_n))
    g2a2 = u(kg[5], (num_s, num_s))

    # fc_2 (no bias) folded with blocker BN (eval stats mean=0, var=1)
    wf_raw = u(ks[13], (num_in, num_in))
    gamma = 1.0 + u(ks[14], (num_in,), 0.1)
    beta = u(ks[15], (num_in,), 0.1)
    s = gamma / jnp.sqrt(1.0 + eps)
    wf = wf_raw * s[:, None]
    bf = beta.reshape(num_in, 1)

    return (ws, bs, wp, bp, ws2, bs2,
            g1a1, g1b1, g1a2, g2a1, g2b1, g2a2, wf, bf)


def fi_reference(xf, yf, params):
    """Pure-JAX reference (same folded params, un-collapsed math)."""
    (ws, bs, wp, bp, ws2, bs2,
     g1a1, g1b1, g1a2, g2a1, g2b1, g2a2, wf, bf) = params
    HW = xf.shape[-1]
    xs = jnp.einsum('oc,bcn->bon', ws, xf) + bs
    yp = jnp.einsum('oc,bcn->bon', wp, yf) + bp
    xs2 = jnp.einsum('oc,bcn->bon', ws2, xf) + bs2
    z = jnp.einsum('bsn,bkn->bsk', xs, yp) / HW

    def gcn(z, a1, b1, a2):
        h = jnp.einsum('bsk,ok->bso', z, a1) + b1
        h = h + z
        h = jnp.where(h >= 0.0, h, 0.2 * h)
        return jnp.einsum('ot,btk->bok', a2, h)

    z = gcn(z, g1a1, g1b1, g1a2)
    z = gcn(z, g2a1, g2b1, g2a2)
    xr = jnp.einsum('bsk,bsn->bkn', z, xs2)
    proj = jnp.einsum('oc,bcn->bon', wf, xr) + bf
    return xf + proj


if __name__ == "__main__":
    key = jax.random.PRNGKey(0)
    kx, ky, kp = jax.random.split(key, 3)

    num_in, num_mid, H, W = 1, 1, 16, 16
    params = make_params(kp, num_in, num_mid)

    ok = True
    for B in (2, 11):   # 11 exercises the sublane-padding + slicing path
        kxb, kyb = jax.random.split(jax.random.fold_in(kx, B), 2)
        x = jax.random.normal(kxb, (B, num_in, H, W), jnp.float32)
        y = jax.random.normal(kyb, (B, num_in, H, W), jnp.float32)

        out = fi_forward(x, y, params)
        out = jax.block_until_ready(out)

        ref = fi_reference(x.reshape(B, num_in, H * W),
                           y.reshape(B, num_in, H * W),
                           params).reshape(B, num_in, H, W)
        assert out.shape == x.shape
        ok &= bool(jnp.allclose(out, ref, atol=1e-4, rtol=1e-4))

    assert ok, "mismatch vs reference"
    print("KERNEL_OK")
</pallas_src>

<mosaic_0001>
module attributes {stable_mosaic.version = 11 : i64} {
  func.func @_fi_kernel(%arg0: i32, %arg1: memref<25xf32, #tpu.memory_space<smem>>, %arg2: memref<8x256xf32, #tpu.memory_space<vmem>>, %arg3: memref<8x256xf32, #tpu.memory_space<vmem>>, %arg4: memref<8x256xf32, #tpu.memory_space<vmem>>) attributes {dimension_semantics = [#tpu.dimension_semantics<parallel>], iteration_bounds = array<i64: 1>, scalar_prefetch = 1 : i64, scratch_operands = 0 : i64, tpu.core_type = #tpu.core_type<tc>, window_params = [{transform_indices = @transform_0, window_bounds = array<i64: 8, 256>}, {transform_indices = @transform_1, window_bounds = array<i64: 8, 256>}, {transform_indices = @transform_2, window_bounds = array<i64: 8, 256>}]} {
    %c0 = arith.constant 0 : index
    %c0_0 = arith.constant 0 : index
    %0 = vector.load %arg2[%c0, %c0_0] : memref<8x256xf32, #tpu.memory_space<vmem>>, vector<8x256xf32>
    %c0_1 = arith.constant 0 : index
    %c0_2 = arith.constant 0 : index
    %1 = vector.load %arg3[%c0_1, %c0_2] : memref<8x256xf32, #tpu.memory_space<vmem>>, vector<8x256xf32>
    %c0_3 = arith.constant 0 : index
    %2 = memref.load %arg1[%c0_3] : memref<25xf32, #tpu.memory_space<smem>>
    %c1 = arith.constant 1 : index
    %3 = memref.load %arg1[%c1] : memref<25xf32, #tpu.memory_space<smem>>
    %c2 = arith.constant 2 : index
    %4 = memref.load %arg1[%c2] : memref<25xf32, #tpu.memory_space<smem>>
    %c3 = arith.constant 3 : index
    %5 = memref.load %arg1[%c3] : memref<25xf32, #tpu.memory_space<smem>>
    %c4 = arith.constant 4 : index
    %6 = memref.load %arg1[%c4] : memref<25xf32, #tpu.memory_space<smem>>
    %c5 = arith.constant 5 : index
    %7 = memref.load %arg1[%c5] : memref<25xf32, #tpu.memory_space<smem>>
    %c6 = arith.constant 6 : index
    %8 = memref.load %arg1[%c6] : memref<25xf32, #tpu.memory_space<smem>>
    %c7 = arith.constant 7 : index
    %9 = memref.load %arg1[%c7] : memref<25xf32, #tpu.memory_space<smem>>
    %c8 = arith.constant 8 : index
    %10 = memref.load %arg1[%c8] : memref<25xf32, #tpu.memory_space<smem>>
    %c9 = arith.constant 9 : index
    %11 = memref.load %arg1[%c9] : memref<25xf32, #tpu.memory_space<smem>>
    %c10 = arith.constant 10 : index
    %12 = memref.load %arg1[%c10] : memref<25xf32, #tpu.memory_space<smem>>
    %c11 = arith.constant 11 : index
    %13 = memref.load %arg1[%c11] : memref<25xf32, #tpu.memory_space<smem>>
    %c12 = arith.constant 12 : index
    %14 = memref.load %arg1[%c12] : memref<25xf32, #tpu.memory_space<smem>>
    %c13 = arith.constant 13 : index
    %15 = memref.load %arg1[%c13] : memref<25xf32, #tpu.memory_space<smem>>
    %c14 = arith.constant 14 : index
    %16 = memref.load %arg1[%c14] : memref<25xf32, #tpu.memory_space<smem>>
    %c15 = arith.constant 15 : index
    %17 = memref.load %arg1[%c15] : memref<25xf32, #tpu.memory_space<smem>>
    %c16 = arith.constant 16 : index
    %18 = memref.load %arg1[%c16] : memref<25xf32, #tpu.memory_space<smem>>
    %c17 = arith.constant 17 : index
    %19 = memref.load %arg1[%c17] : memref<25xf32, #tpu.memory_space<smem>>
    %c18 = arith.constant 18 : index
    %20 = memref.load %arg1[%c18] : memref<25xf32, #tpu.memory_space<smem>>
    %c19 = arith.constant 19 : index
    %21 = memref.load %arg1[%c19] : memref<25xf32, #tpu.memory_space<smem>>
    %c20 = arith.constant 20 : index
    %22 = memref.load %arg1[%c20] : memref<25xf32, #tpu.memory_space<smem>>
    %c21 = arith.constant 21 : index
    %23 = memref.load %arg1[%c21] : memref<25xf32, #tpu.memory_space<smem>>
    %c22 = arith.constant 22 : index
    %24 = memref.load %arg1[%c22] : memref<25xf32, #tpu.memory_space<smem>>
    %c23 = arith.constant 23 : index
    %25 = memref.load %arg1[%c23] : memref<25xf32, #tpu.memory_space<smem>>
    %c24 = arith.constant 24 : index
    %26 = memref.load %arg1[%c24] : memref<25xf32, #tpu.memory_space<smem>>
    %27 = arith.mulf %0, %1 : vector<8x256xf32>
    %cst = arith.constant dense<0.000000e+00> : vector<8xf32>
    %28 = vector.multi_reduction <add>, %27, %cst [1] : vector<8x256xf32> to vector<8xf32>
    %29 = vector.shape_cast %28 : vector<8xf32> to vector<8x1xf32>
    %cst_4 = arith.constant dense<0.000000e+00> : vector<8xf32>
    %30 = vector.multi_reduction <add>, %0, %cst_4 [1] : vector<8x256xf32> to vector<8xf32>
    %31 = vector.shape_cast %30 : vector<8xf32> to vector<8x1xf32>
    %cst_5 = arith.constant dense<0.000000e+00> : vector<8xf32>
    %32 = vector.multi_reduction <add>, %1, %cst_5 [1] : vector<8x256xf32> to vector<8xf32>
    %33 = vector.shape_cast %32 : vector<8xf32> to vector<8x1xf32>
    %34 = vector.broadcast %2 : f32 to vector<8x1xf32>
    %35 = arith.mulf %34, %29 : vector<8x1xf32>
    %36 = vector.broadcast %4 : f32 to vector<8x1xf32>
    %37 = arith.mulf %36, %31 : vector<8x1xf32>
    %38 = arith.addf %35, %37 : vector<8x1xf32>
    %39 = vector.broadcast %6 : f32 to vector<8x1xf32>
    %40 = arith.mulf %39, %33 : vector<8x1xf32>
    %41 = arith.addf %38, %40 : vector<8x1xf32>
    %42 = vector.broadcast %8 : f32 to vector<8x1xf32>
    %43 = arith.addf %41, %42 : vector<8x1xf32>
    %44 = vector.broadcast %3 : f32 to vector<8x1xf32>
    %45 = arith.mulf %44, %29 : vector<8x1xf32>
    %46 = vector.broadcast %5 : f32 to vector<8x1xf32>
    %47 = arith.mulf %46, %31 : vector<8x1xf32>
    %48 = arith.addf %45, %47 : vector<8x1xf32>
    %49 = vector.broadcast %7 : f32 to vector<8x1xf32>
    %50 = arith.mulf %49, %33 : vector<8x1xf32>
    %51 = arith.addf %48, %50 : vector<8x1xf32>
    %52 = vector.broadcast %9 : f32 to vector<8x1xf32>
    %53 = arith.addf %51, %52 : vector<8x1xf32>
    %54 = vector.broadcast %14 : f32 to vector<8x1xf32>
    %55 = arith.mulf %54, %43 : vector<8x1xf32>
    %56 = vector.broadcast %15 : f32 to vector<8x1xf32>
    %57 = arith.addf %55, %56 : vector<8x1xf32>
    %58 = arith.addf %57, %43 : vector<8x1xf32>
    %59 = vector.broadcast %14 : f32 to vector<8x1xf32>
    %60 = arith.mulf %59, %53 : vector<8x1xf32>
    %61 = vector.broadcast %15 : f32 to vector<8x1xf32>
    %62 = arith.addf %60, %61 : vector<8x1xf32>
    %63 = arith.addf %62, %53 : vector<8x1xf32>
    %cst_6 = arith.constant 0.000000e+00 : f32
    %64 = vector.broadcast %cst_6 : f32 to vector<8x1xf32>
    %65 = arith.cmpf oge, %58, %64 : vector<8x1xf32>
    %cst_7 = arith.constant 2.000000e-01 : f32
    %66 = vector.broadcast %cst_7 : f32 to vector<8x1xf32>
    %67 = arith.mulf %66, %58 : vector<8x1xf32>
    %68 = arith.select %65, %58, %67 : vector<8x1xi1>, vector<8x1xf32>
    %cst_8 = arith.constant 0.000000e+00 : f32
    %69 = vector.broadcast %cst_8 : f32 to vector<8x1xf32>
    %70 = arith.cmpf oge, %63, %69 : vector<8x1xf32>
    %cst_9 = arith.constant 2.000000e-01 : f32
    %71 = vector.broadcast %cst_9 : f32 to vector<8x1xf32>
    %72 = arith.mulf %71, %63 : vector<8x1xf32>
    %73 = arith.select %70, %63, %72 : vector<8x1xi1>, vector<8x1xf32>
    %74 = vector.broadcast %16 : f32 to vector<8x1xf32>
    %75 = arith.mulf %74, %68 : vector<8x1xf32>
    %76 = vector.broadcast %17 : f32 to vector<8x1xf32>
    %77 = arith.mulf %76, %73 : vector<8x1xf32>
    %78 = arith.addf %75, %77 : vector<8x1xf32>
    %79 = vector.broadcast %18 : f32 to vector<8x1xf32>
    %80 = arith.mulf %79, %68 : vector<8x1xf32>
    %81 = vector.broadcast %19 : f32 to vector<8x1xf32>
    %82 = arith.mulf %81, %73 : vector<8x1xf32>
    %83 = arith.addf %80, %82 : vector<8x1xf32>
    %84 = vector.broadcast %20 : f32 to vector<8x1xf32>
    %85 = arith.mulf %84, %78 : vector<8x1xf32>
    %86 = vector.broadcast %21 : f32 to vector<8x1xf32>
    %87 = arith.addf %85, %86 : vector<8x1xf32>
    %88 = arith.addf %87, %78 : vector<8x1xf32>
    %89 = vector.broadcast %20 : f32 to vector<8x1xf32>
    %90 = arith.mulf %89, %83 : vector<8x1xf32>
    %91 = vector.broadcast %21 : f32 to vector<8x1xf32>
    %92 = arith.addf %90, %91 : vector<8x1xf32>
    %93 = arith.addf %92, %83 : vector<8x1xf32>
    %cst_10 = arith.constant 0.000000e+00 : f32
    %94 = vector.broadcast %cst_10 : f32 to vector<8x1xf32>
    %95 = arith.cmpf oge, %88, %94 : vector<8x1xf32>
    %cst_11 = arith.constant 2.000000e-01 : f32
    %96 = vector.broadcast %cst_11 : f32 to vector<8x1xf32>
    %97 = arith.mulf %96, %88 : vector<8x1xf32>
    %98 = arith.select %95, %88, %97 : vector<8x1xi1>, vector<8x1xf32>
    %cst_12 = arith.constant 0.000000e+00 : f32
    %99 = vector.broadcast %cst_12 : f32 to vector<8x1xf32>
    %100 = arith.cmpf oge, %93, %99 : vector<8x1xf32>
    %cst_13 = arith.constant 2.000000e-01 : f32
    %101 = vector.broadcast %cst_13 : f32 to vector<8x1xf32>
    %102 = arith.mulf %101, %93 : vector<8x1xf32>
    %103 = arith.select %100, %93, %102 : vector<8x1xi1>, vector<8x1xf32>
    %104 = vector.broadcast %22 : f32 to vector<8x1xf32>
    %105 = arith.mulf %104, %98 : vector<8x1xf32>
    %106 = vector.broadcast %23 : f32 to vector<8x1xf32>
    %107 = arith.mulf %106, %103 : vector<8x1xf32>
    %108 = arith.addf %105, %107 : vector<8x1xf32>
    %109 = vector.broadcast %24 : f32 to vector<8x1xf32>
    %110 = arith.mulf %109, %98 : vector<8x1xf32>
    %111 = vector.broadcast %25 : f32 to vector<8x1xf32>
    %112 = arith.mulf %111, %103 : vector<8x1xf32>
    %113 = arith.addf %110, %112 : vector<8x1xf32>
    %114 = vector.broadcast %10 : f32 to vector<8x1xf32>
    %115 = arith.mulf %108, %114 : vector<8x1xf32>
    %cst_14 = arith.constant 1.000000e+00 : f32
    %116 = vector.broadcast %cst_14 : f32 to vector<8x1xf32>
    %117 = arith.addf %116, %115 : vector<8x1xf32>
    %118 = vector.broadcast %11 : f32 to vector<8x1xf32>
    %119 = arith.mulf %113, %118 : vector<8x1xf32>
    %120 = arith.addf %117, %119 : vector<8x1xf32>
    %121 = vector.broadcast %12 : f32 to vector<8x1xf32>
    %122 = arith.mulf %108, %121 : vector<8x1xf32>
    %123 = vector.broadcast %13 : f32 to vector<8x1xf32>
    %124 = arith.mulf %113, %123 : vector<8x1xf32>
    %125 = arith.addf %122, %124 : vector<8x1xf32>
    %126 = vector.broadcast %26 : f32 to vector<8x1xf32>
    %127 = arith.addf %125, %126 : vector<8x1xf32>
    %128 = vector.broadcast %120 : vector<8x1xf32> to vector<8x256xf32>
    %129 = arith.mulf %128, %0 : vector<8x256xf32>
    %130 = vector.broadcast %127 : vector<8x1xf32> to vector<8x256xf32>
    %131 = arith.addf %129, %130 : vector<8x256xf32>
    %c0_15 = arith.constant 0 : index
    %c0_16 = arith.constant 0 : index
    %132 = vector.load %arg4[%c0_15, %c0_16] : memref<8x256xf32, #tpu.memory_space<vmem>>, vector<8x256xf32>
    tpu.vector_store %arg4[%c0_15, %c0_16], %131 {strides = array<i32>} : memref<8x256xf32, #tpu.memory_space<vmem>>, vector<8x256xf32>,
    return
  }
  func.func @transform_0(%arg0: i32, %arg1: memref<25xf32, #tpu.memory_space<smem>>) -> (i32, i32) {
    %c0_i32 = arith.constant 0 : i32
    %c0_i32_0 = arith.constant 0 : i32
    return %arg0, %c0_i32 : i32, i32
  }
  func.func @transform_1(%arg0: i32, %arg1: memref<25xf32, #tpu.memory_space<smem>>) -> (i32, i32) {
    %c0_i32 = arith.constant 0 : i32
    %c0_i32_0 = arith.constant 0 : i32
    return %arg0, %c0_i32 : i32, i32
  }
  func.func @transform_2(%arg0: i32, %arg1: memref<25xf32, #tpu.memory_space<smem>>) -> (i32, i32) {
    %c0_i32 = arith.constant 0 : i32
    %c0_i32_0 = arith.constant 0 : i32
    return %arg0, %c0_i32 : i32, i32
  }
}

</mosaic_0001>

<llo_original>
// kernel: tpu_custom_call.1
$region0: #{tpu_custom_call.1}
  #allocation0 [shape = 'u32[]', space=smem, size = 0x4, offset = 0x4, fixed_abs, tag = 'smem constant byte address 0x4 - core index']
  #allocation1 [shape = 'u32[144,128]{1,0:T(1,128)}', space=vmem, size = 0x12000, scoped, tag = 'internal scratch']
  #allocation2 [shape = 's32[1]{0}', space=sflag, size = 0x4, scoped, tag = 'scoped memory for tpu_custom_call.1']
  #allocation3 [shape = 'u8[512]{0}', space=smem, size = 0x200, scoped, tag = 'prefetched SMEM operand 0']
  %s0 = inlined_call_operand.hbm [shape: f32[25], index: 0, kind: input, shape index: {}]
  %s1 = inlined_call_operand.hbm [shape: f32[8,256], index: 1, kind: input, shape index: {}]
  %s2 = inlined_call_operand.hbm [shape: f32[8,256], index: 2, kind: input, shape index: {}]
  %s3 = inlined_call_operand.hbm [shape: f32[8,256], index: 3, kind: output, shape index: {}]
  %s4 = sld [smem:[#allocation0]]
  $region26: #{tpu_custom_call.1} parent=0
    _
  %s6 = ssub.s32 1, %s4
  %s7 = scalar_select 0, %s6, %s4
  %9 = dma.hbm_to_smem %s0, 16, [#allocation3], [#allocation2]
  %10 = dma.done [#allocation2], 16
  %11 = sfence
  $region1: #{tpu_custom_call.1} parent=0
    #allocation4 [shape = 'u8[8192]{0}', space=vmem, size = 0x2000, scoped, tag = 'input window, operand 1, single buffered']
    #allocation5 [shape = 's32[1]{0}', space=sflag, size = 0x4, scoped, tag = 'scoped memory for tpu_custom_call.1']
    #allocation6 [shape = 's32[1]{0}', space=sflag, size = 0x4, scoped, tag = 'scoped memory for tpu_custom_call.1']
    #allocation7 [shape = 'u8[8192]{0}', space=vmem, size = 0x2000, scoped, tag = 'input window, operand 2, single buffered']
    #allocation8 [shape = 's32[1]{0}', space=sflag, size = 0x4, scoped, tag = 'scoped memory for tpu_custom_call.1']
    #allocation9 [shape = 'u8[8192]{0}', space=vmem, size = 0x2000, scoped, tag = 'output window, operand 0, single buffered']
    %12 = vsyncpa [#allocation5], 0
    %13 = vsyncpa [#allocation8], 0
    %14 = vsyncpa [#allocation6], 0
    // Predicated region
    $region2: #{tpu_custom_call.1} parent=1 // pred_check
      _
    $region3: #{tpu_custom_call.1} parent=1 // pred_check_branch
      %16 = sbr.rel (0) target = $region5
    $region4: #{tpu_custom_call.1} parent=1 // pred_region
      %s18 = ssub.s32 256, 256
      %19 = vsyncadd [#allocation5], %s18
      %s21 = sshll.u32 [#allocation4], 4
      %s22 = int_to_ptr.vmem [resolvable:$true] %s21
      %24 = dma.hbm_to_vmem [thread:$0]  %s1, 256, %s22, [#allocation5]
    $region5: #{tpu_custom_call.1} parent=1 // pred_fallthru
      _
    // Predicated region
    $region6: #{tpu_custom_call.1} parent=1 // pred_check
      _
    $region7: #{tpu_custom_call.1} parent=1 // pred_check_branch
      %26 = sbr.rel (0) target = $region9
    $region8: #{tpu_custom_call.1} parent=1 // pred_region
      %s28 = ssub.s32 256, 256
      %29 = vsyncadd [#allocation8], %s28
      %s31 = sshll.u32 [#allocation7], 4
      %s32 = int_to_ptr.vmem [resolvable:$true] %s31
      %34 = dma.hbm_to_vmem [thread:$0]  %s2, 256, %s32, [#allocation8]
    $region9: #{tpu_custom_call.1} parent=1 // pred_fallthru
      _
    // Predicated region
    $region10: #{tpu_custom_call.1} parent=1 // pred_check
      _
    $region11: #{tpu_custom_call.1} parent=1 // pred_check_branch
      %36 = sbr.rel (0) target = $region13
    $region12: #{tpu_custom_call.1} parent=1 // pred_region
      %37 = dma.done [#allocation5], 256
    $region13: #{tpu_custom_call.1} parent=1 // pred_fallthru
      _
    // Predicated region
    $region14: #{tpu_custom_call.1} parent=1 // pred_check
      _
    $region15: #{tpu_custom_call.1} parent=1 // pred_check_branch
      %39 = sbr.rel (0) target = $region17
    $region16: #{tpu_custom_call.1} parent=1 // pred_region
      %40 = dma.done [#allocation8], 256
    $region17: #{tpu_custom_call.1} parent=1 // pred_fallthru
      _
    %v41 = vld [vmem:[#allocation4] sm:$0xff]
    %v42 = vld [vmem:[#allocation4 + $0x8] sm:$0xff]
    %v43 = vld [vmem:[#allocation7] sm:$0xff]
    %v44 = vld [vmem:[#allocation7 + $0x8] sm:$0xff]
    %s45 = sld [smem:[#allocation3]]
    %s46 = sld [smem:[#allocation3 + $0x1]]
    %s47 = sld [smem:[#allocation3 + $0x2]]
    %s48 = sld [smem:[#allocation3 + $0x3]]
    %s49 = sld [smem:[#allocation3 + $0x4]]
    %s50 = sld [smem:[#allocation3 + $0x5]]
    %s51 = sld [smem:[#allocation3 + $0x6]]
    %s52 = sld [smem:[#allocation3 + $0x7]]
    %s53 = sld [smem:[#allocation3 + $0x8]]
    %s54 = sld [smem:[#allocation3 + $0x9]]
    %s55 = sld [smem:[#allocation3 + $0xa]]
    %s56 = sld [smem:[#allocation3 + $0xb]]
    %s57 = sld [smem:[#allocation3 + $0xc]]
    %s58 = sld [smem:[#allocation3 + $0xd]]
    %s59 = sld [smem:[#allocation3 + $0xe]]
    %s60 = sld [smem:[#allocation3 + $0xf]]
    %s61 = sld [smem:[#allocation3 + $0x10]]
    %s62 = sld [smem:[#allocation3 + $0x11]]
    %s63 = sld [smem:[#allocation3 + $0x12]]
    %s64 = sld [smem:[#allocation3 + $0x13]]
    %s65 = sld [smem:[#allocation3 + $0x14]]
    %s66 = sld [smem:[#allocation3 + $0x15]]
    %s67 = sld [smem:[#allocation3 + $0x16]]
    %s68 = sld [smem:[#allocation3 + $0x17]]
    %s69 = sld [smem:[#allocation3 + $0x18]]
    %v70 = vmul.f32 %v41, %v43
    %v71 = vmul.f32 %v42, %v44
    %v72 = vadd.f32 %v70, %v71
    %73 = vadd.xlane.f32.xlu0 %v72
    %v74 = vpop.xlane.xlu0 %73
    %v75 = vadd.f32 %v41, %v42
    %76 = vadd.xlane.f32.xlu0 %v75
    %v77 = vpop.xlane.xlu0 %76
    %v78 = vadd.f32 %v43, %v44
    %79 = vadd.xlane.f32.xlu0 %v78
    %v80 = vpop.xlane.xlu0 %79
    %v81 = vstv %s45
    %v82 = vmul.f32 %v81, %v74
    %v83 = vstv %s47
    %v84 = vmul.f32 %v83, %v77
    %v85 = vadd.f32 %v82, %v84
    %v86 = vstv %s49
    %v87 = vmul.f32 %v86, %v80
    %v88 = vadd.f32 %v85, %v87
    %v89 = vstv %s51
    %v90 = vadd.f32 %v88, %v89
    %v91 = vstv %s46
    %v92 = vmul.f32 %v91, %v74
    %v93 = vstv %s48
    %v94 = vmul.f32 %v93, %v77
    %v95 = vadd.f32 %v92, %v94
    %v96 = vstv %s50
    %v97 = vmul.f32 %v96, %v80
    %v98 = vadd.f32 %v95, %v97
    %v99 = vstv %s52
    %v100 = vadd.f32 %v98, %v99
    %v101 = vstv %s57
    %v102 = vmul.f32 %v101, %v90
    %v103 = vstv %s58
    %v104 = vadd.f32 %v102, %v103
    %v105 = vadd.f32 %v104, %v90
    %v106 = vmul.f32 %v101, %v100
    %v107 = vadd.f32 %v106, %v103
    %v108 = vadd.f32 %v107, %v100
    %vm109 = vcmp.ge.f32.partialorder %v105, 0.0
    %v110 = vmul.f32 %v105, 0.2
    %v111 = vsel %vm109, %v105, %v110
    %vm112 = vcmp.ge.f32.partialorder %v108, 0.0
    %v113 = vmul.f32 %v108, 0.2
    %v114 = vsel %vm112, %v108, %v113
    %v115 = vstv %s59
    %v116 = vmul.f32 %v115, %v111
    %v117 = vstv %s60
    %v118 = vmul.f32 %v117, %v114
    %v119 = vadd.f32 %v116, %v118
    %v120 = vstv %s61
    %v121 = vmul.f32 %v120, %v111
    %v122 = vstv %s62
    %v123 = vmul.f32 %v122, %v114
    %v124 = vadd.f32 %v121, %v123
    %v125 = vstv %s63
    %v126 = vmul.f32 %v125, %v119
    %v127 = vstv %s64
    %v128 = vadd.f32 %v126, %v127
    %v129 = vadd.f32 %v128, %v119
    %v130 = vmul.f32 %v125, %v124
    %v131 = vadd.f32 %v130, %v127
    %v132 = vadd.f32 %v131, %v124
    %vm133 = vcmp.ge.f32.partialorder %v129, 0.0
    %v134 = vmul.f32 %v129, 0.2
    %v135 = vsel %vm133, %v129, %v134
    %vm136 = vcmp.ge.f32.partialorder %v132, 0.0
    %v137 = vmul.f32 %v132, 0.2
    %v138 = vsel %vm136, %v132, %v137
    %v139 = vstv %s65
    %v140 = vmul.f32 %v139, %v135
    %v141 = vstv %s66
    %v142 = vmul.f32 %v141, %v138
    %v143 = vadd.f32 %v140, %v142
    %v144 = vstv %s67
    %v145 = vmul.f32 %v144, %v135
    %v146 = vstv %s68
    %v147 = vmul.f32 %v146, %v138
    %v148 = vadd.f32 %v145, %v147
    %v149 = vstv %s53
    %v150 = vmul.f32 %v143, %v149
    %v151 = vadd.f32 %v150, 1.0
    %v152 = vstv %s54
    %v153 = vmul.f32 %v148, %v152
    %v154 = vadd.f32 %v151, %v153
    %v155 = vstv %s55
    %v156 = vmul.f32 %v143, %v155
    %v157 = vstv %s56
    %v158 = vmul.f32 %v148, %v157
    %v159 = vadd.f32 %v156, %v158
    %v160 = vstv %s69
    %v161 = vadd.f32 %v159, %v160
    %v162 = vmul.f32 %v154, %v41
    %v163 = vmul.f32 %v154, %v42
    %v164 = vadd.f32 %v162, %v161
    %v165 = vadd.f32 %v163, %v161
    %166 = vst [vmem:[#allocation9] sm:$0xff] %v164
    %167 = vst [vmem:[#allocation9 + $0x8] sm:$0xff] %v165
    // Predicated region
    $region18: #{tpu_custom_call.1} parent=1 // pred_check
      _
    $region19: #{tpu_custom_call.1} parent=1 // pred_check_branch
      %169 = sbr.rel (0) target = $region21
    $region20: #{tpu_custom_call.1} parent=1 // pred_region
      %s171 = ssub.s32 256, 256
      %172 = vsyncadd [#allocation6], %s171
      %s174 = sshll.u32 [#allocation9], 4
      %s175 = int_to_ptr.vmem [resolvable:$true] %s174
      %177 = dma.vmem_to_hbm [thread:$0]  %s175, 256, %s3, [#allocation6]
    $region21: #{tpu_custom_call.1} parent=1 // pred_fallthru
      _
    // Predicated region
    $region22: #{tpu_custom_call.1} parent=1 // pred_check
      _
    $region23: #{tpu_custom_call.1} parent=1 // pred_check_branch
      %179 = sbr.rel (0) target = $region25
    $region24: #{tpu_custom_call.1} parent=1 // pred_region
      %180 = dma.done [#allocation6], 256
    $region25: #{tpu_custom_call.1} parent=1 // pred_fallthru
      _
    %181 = vsyncpa [#allocation5], 1
    %182 = vsyncpa [#allocation8], 1
    %183 = vsyncpa [#allocation6], 1

</llo_original>
